<compile_context>
chip_gen: v7x
topology: tpu7x:2x2x1
jax: 0.10.0
libtpu: 0.0.40
codegen_flags: <defaults>
</compile_context>

<pallas_src>
import jax
import jax.numpy as jnp
from jax.experimental import pallas as pl
from jax.experimental.pallas import tpu as pltpu


def _round_up(a, b):
    return (a + b - 1) // b * b


def _gn_block_kernel(x_ref, ef_ref, dst_ref,
                     wm_ref, wux_ref, wua_ref, bu_ref,
                     out_ref,
                     xw_acc, agg_acc):
    i = pl.program_id(0)            # node-tile index   ("parallel")
    e = pl.program_id(1)            # edge-tile index   ("arbitrary" / reduction)
    n_e = pl.num_programs(1)

    tn = agg_acc.shape[0]           # static node-tile size

    # ---- init at first edge step: zero agg, compute x @ Wu_x once per node tile
    @pl.when(e == 0)
    def _():
        xw_acc[...] = jnp.dot(x_ref[...], wux_ref[...],
                              preferred_element_type=jnp.float32)
        agg_acc[...] = jnp.zeros_like(agg_acc)

    # ---- fused edge-message matmul (bias folded into the weight) + ReLU ----
    m = jnp.maximum(
        jnp.dot(ef_ref[...], wm_ref[...], preferred_element_type=jnp.float32),
        0.0)                                                   # (TE, msg_pad)

    # ---- scatter-add as a one-hot matmul; one-hot built pre-transposed ----
    te = m.shape[0]
    local_dst = dst_ref[...] - i * tn                          # (1, TE) cheap shift
    row_ids = jax.lax.broadcasted_iota(jnp.int32, (tn, te), 0) # (TN, TE)
    onehot = (row_ids == local_dst).astype(jnp.float32)        # (TN, TE)
    agg_acc[...] += jnp.dot(onehot, m,
                            preferred_element_type=jnp.float32)  # (TN, msg_pad)

    # ---- finalize at last edge step: node update + GNBlock activation ----
    @pl.when(e == n_e - 1)
    def _():
        y = (xw_acc[...]
             + jnp.dot(agg_acc[...], wua_ref[...],
                       preferred_element_type=jnp.float32)
             + bu_ref[...])
        out_ref[...] = jnp.maximum(y, 0.0)                      # act = ReLU; norm = None


def gn_block_forward(x, edge_index, edge_attr, params, *, tn=256, te=512):
    """x: (N, indim) f32; edge_index: (2, E) int32; edge_attr: (E, edgedim) f32."""
    N, indim = x.shape
    E = edge_index.shape[1]
    msgdim = params["wm_s"].shape[1]
    outdim = params["wu_x"].shape[1]

    LANE = 128
    msg_pad = _round_up(msgdim, LANE)
    out_pad = _round_up(outdim, LANE)

    TN = min(tn, _round_up(N, 8))
    TE = min(te, _round_up(E, LANE))
    N_pad = _round_up(N, TN)
    E_pad = _round_up(E, TE)

    # ---- wrapper glue: per-edge gather + feature/bias fusion (indexing only) ----
    src = edge_index[0].astype(jnp.int32)
    dst = edge_index[1].astype(jnp.int32)
    ones = jnp.ones((E, 1), jnp.float32)
    ef = jnp.concatenate([jnp.take(x, src, axis=0),
                          jnp.take(x, dst, axis=0),
                          edge_attr,
                          ones], axis=1).astype(jnp.float32)   # (E, 2*indim+edgedim+1)
    K = ef.shape[1]

    # Pad edges; padded edges get dst = -1 (matches no node) and zero features
    # (zero ones-column => their message is ReLU(0) = 0 anyway).
    ef = jnp.pad(ef, ((0, E_pad - E), (0, 0)))
    dst_row = jnp.pad(dst, (0, E_pad - E), constant_values=-1).reshape(1, E_pad)
    x_p = jnp.pad(x.astype(jnp.float32), ((0, N_pad - N), (0, 0)))

    # Fused message weight (bias stacked as last row) + lane padding.
    wm = jnp.concatenate([params["wm_s"], params["wm_d"], params["wm_e"],
                          params["bm"]], axis=0)
    wm = jnp.pad(wm, ((0, 0), (0, msg_pad - msgdim)))                   # (K, msg_pad)
    wux = jnp.pad(params["wu_x"], ((0, 0), (0, out_pad - outdim)))      # (indim, out_pad)
    wua = jnp.pad(params["wu_a"],
                  ((0, msg_pad - msgdim), (0, out_pad - outdim)))       # (msg_pad, out_pad)
    bu = jnp.pad(params["bu"], ((0, 0), (0, out_pad - outdim)))         # (1, out_pad)

    grid = (N_pad // TN, E_pad // TE)

    grid_spec = pltpu.PrefetchScalarGridSpec(
        num_scalar_prefetch=0,
        grid=grid,
        in_specs=[
            pl.BlockSpec((TN, indim), lambda i, e: (i, 0)),        # x (node tile)
            pl.BlockSpec((TE, K), lambda i, e: (e, 0)),            # fused edge features
            pl.BlockSpec((1, TE), lambda i, e: (0, e)),            # dst ids (lane-dense)
            pl.BlockSpec((K, msg_pad), lambda i, e: (0, 0)),       # fused message weight+bias
            pl.BlockSpec((indim, out_pad), lambda i, e: (0, 0)),   # wu_x
            pl.BlockSpec((msg_pad, out_pad), lambda i, e: (0, 0)), # wu_a
            pl.BlockSpec((1, out_pad), lambda i, e: (0, 0)),       # bu
        ],
        out_specs=pl.BlockSpec((TN, out_pad), lambda i, e: (i, 0)),
        scratch_shapes=[
            pltpu.VMEM((TN, out_pad), jnp.float32),   # x @ Wu_x (computed at e == 0)
            pltpu.VMEM((TN, msg_pad), jnp.float32),   # agg accumulator
        ],
    )

    out = pl.pallas_call(
        _gn_block_kernel,
        out_shape=jax.ShapeDtypeStruct((N_pad, out_pad), jnp.float32),
        grid_spec=grid_spec,
        compiler_params=pltpu.CompilerParams(
            dimension_semantics=("parallel", "arbitrary"),
            vmem_limit_bytes=32 * 1024 * 1024,
        ),
    )(x_p, ef, dst_row, wm, wux, wua, bu)

    return out[:N, :outdim]


def _reference(x, edge_index, edge_attr, params):
    src, dst = edge_index[0], edge_index[1]
    m = (x[src] @ params["wm_s"] + x[dst] @ params["wm_d"]
         + edge_attr @ params["wm_e"] + params["bm"])
    m = jnp.maximum(m, 0.0)
    agg = jnp.zeros((x.shape[0], m.shape[1]), jnp.float32).at[dst].add(m)
    y = x @ params["wu_x"] + agg @ params["wu_a"] + params["bu"]
    return jnp.maximum(y, 0.0)


def init_params(key, indim, outdim, edgedim):
    msgdim = outdim  # GNLayer(indim, outdim, outdim, edgedim)
    ks = jax.random.split(key, 7)
    s = 0.1
    return {
        "wm_s": s * jax.random.normal(ks[0], (indim, msgdim), jnp.float32),
        "wm_d": s * jax.random.normal(ks[1], (indim, msgdim), jnp.float32),
        "wm_e": s * jax.random.normal(ks[2], (edgedim, msgdim), jnp.float32),
        "bm":   s * jax.random.normal(ks[3], (1, msgdim), jnp.float32),
        "wu_x": s * jax.random.normal(ks[4], (indim, outdim), jnp.float32),
        "wu_a": s * jax.random.normal(ks[5], (msgdim, outdim), jnp.float32),
        "bu":   s * jax.random.normal(ks[6], (1, outdim), jnp.float32),
    }


if __name__ == "__main__":
    N, E = 16, 32          # nodes, edges
    indim, outdim, edgedim = 8, 16, 4

    key = jax.random.PRNGKey(0)
    k_x, k_e, k_ea, k_p = jax.random.split(key, 4)

    x = jax.random.normal(k_x, (N, indim), jnp.float32)
    edge_index = jax.random.randint(k_e, (2, E), 0, N, jnp.int32)
    edge_attr = jax.random.normal(k_ea, (E, edgedim), jnp.float32)
    params = init_params(k_p, indim, outdim, edgedim)

    out = gn_block_forward(x, edge_index, edge_attr, params)
    out = jax.block_until_ready(out)

    ref = _reference(x, edge_index, edge_attr, params)
    assert out.shape == (N, outdim)
    assert jnp.allclose(out, ref, atol=1e-3, rtol=1e-3), "mismatch vs JAX reference"

    print("KERNEL_OK")
</pallas_src>

<mosaic_0001>
module attributes {stable_mosaic.version = 11 : i64} {
  func.func @_gn_block_kernel(%arg0: i32, %arg1: i32, %arg2: memref<16x8xf32, #tpu.memory_space<vmem>>, %arg3: memref<128x21xf32, #tpu.memory_space<vmem>>, %arg4: memref<1x128xi32, #tpu.memory_space<vmem>>, %arg5: memref<21x128xf32, #tpu.memory_space<vmem>>, %arg6: memref<8x128xf32, #tpu.memory_space<vmem>>, %arg7: memref<128x128xf32, #tpu.memory_space<vmem>>, %arg8: memref<1x128xf32, #tpu.memory_space<vmem>>, %arg9: memref<16x128xf32, #tpu.memory_space<vmem>>, %arg10: memref<16x128xf32, #tpu.memory_space<vmem>>, %arg11: memref<16x128xf32, #tpu.memory_space<vmem>>) attributes {dimension_semantics = [#tpu.dimension_semantics<parallel>, #tpu.dimension_semantics<arbitrary>], iteration_bounds = array<i64: 1, 1>, scalar_prefetch = 0 : i64, scratch_operands = 2 : i64, tpu.core_type = #tpu.core_type<tc>, window_params = [{transform_indices = @transform_0, window_bounds = array<i64: 16, 8>}, {transform_indices = @transform_1, window_bounds = array<i64: 128, 21>}, {transform_indices = @transform_2, window_bounds = array<i64: 1, 128>}, {pipeline_mode = #tpu.pipeline_mode<synchronous>, transform_indices = @transform_3, window_bounds = array<i64: 21, 128>}, {pipeline_mode = #tpu.pipeline_mode<synchronous>, transform_indices = @transform_4, window_bounds = array<i64: 8, 128>}, {pipeline_mode = #tpu.pipeline_mode<synchronous>, transform_indices = @transform_5, window_bounds = array<i64: 128, 128>}, {pipeline_mode = #tpu.pipeline_mode<synchronous>, transform_indices = @transform_6, window_bounds = array<i64: 1, 128>}, {transform_indices = @transform_7, window_bounds = array<i64: 16, 128>}]} {
    %c0_i32 = arith.constant 0 : i32
    %0 = arith.cmpi eq, %arg1, %c0_i32 : i32
    %1 = arith.extui %0 : i1 to i32
    %c0_i32_0 = arith.constant 0 : i32
    %2 = arith.cmpi ne, %1, %c0_i32_0 : i32
    scf.if %2 {
      %c0_14 = arith.constant 0 : index
      %c0_15 = arith.constant 0 : index
      %24 = vector.load %arg2[%c0_14, %c0_15] : memref<16x8xf32, #tpu.memory_space<vmem>>, vector<16x8xf32>
      %c0_16 = arith.constant 0 : index
      %c0_17 = arith.constant 0 : index
      %25 = vector.load %arg6[%c0_16, %c0_17] : memref<8x128xf32, #tpu.memory_space<vmem>>, vector<8x128xf32>
      %cst_18 = arith.constant dense<0.000000e+00> : vector<16x128xf32>
      %26 = tpu.matmul %24, %25, %cst_18 {dimension_numbers = #tpu.dot_dimension_numbers<[1], [0], [0], [1], [0, 0, 1, 1], [], []>} : vector<16x8xf32>, vector<8x128xf32>, vector<16x128xf32> -> vector<16x128xf32>
      %c0_19 = arith.constant 0 : index
      %c0_20 = arith.constant 0 : index
      %27 = vector.load %arg10[%c0_19, %c0_20] : memref<16x128xf32, #tpu.memory_space<vmem>>, vector<16x128xf32>
      tpu.vector_store %arg10[%c0_19, %c0_20], %26 {strides = array<i32>} : memref<16x128xf32, #tpu.memory_space<vmem>>, vector<16x128xf32>,
      %cst_21 = arith.constant 0.000000e+00 : f32
      %28 = vector.broadcast %cst_21 : f32 to vector<16x128xf32>
      %c0_22 = arith.constant 0 : index
      %c0_23 = arith.constant 0 : index
      %29 = vector.load %arg11[%c0_22, %c0_23] : memref<16x128xf32, #tpu.memory_space<vmem>>, vector<16x128xf32>
      tpu.vector_store %arg11[%c0_22, %c0_23], %28 {strides = array<i32>} : memref<16x128xf32, #tpu.memory_space<vmem>>, vector<16x128xf32>,
    } else {
    }
    %c0 = arith.constant 0 : index
    %c0_1 = arith.constant 0 : index
    %3 = vector.load %arg3[%c0, %c0_1] : memref<128x21xf32, #tpu.memory_space<vmem>>, vector<128x21xf32>
    %c0_2 = arith.constant 0 : index
    %c0_3 = arith.constant 0 : index
    %4 = vector.load %arg5[%c0_2, %c0_3] : memref<21x128xf32, #tpu.memory_space<vmem>>, vector<21x128xf32>
    %cst = arith.constant dense<0.000000e+00> : vector<128x128xf32>
    %5 = tpu.matmul %3, %4, %cst {dimension_numbers = #tpu.dot_dimension_numbers<[1], [0], [0], [1], [0, 0, 1, 1], [], []>} : vector<128x21xf32>, vector<21x128xf32>, vector<128x128xf32> -> vector<128x128xf32>
    %cst_4 = arith.constant 0.000000e+00 : f32
    %6 = vector.broadcast %cst_4 : f32 to vector<128x128xf32>
    %7 = arith.maximumf %5, %6 : vector<128x128xf32>
    %c0_5 = arith.constant 0 : index
    %c0_6 = arith.constant 0 : index
    %8 = vector.load %arg4[%c0_5, %c0_6] : memref<1x128xi32, #tpu.memory_space<vmem>>, vector<1x128xi32>
    %c16_i32 = arith.constant 16 : i32
    %9 = arith.muli %arg0, %c16_i32 : i32
    %10 = vector.broadcast %9 : i32 to vector<1x128xi32>
    %11 = arith.subi %8, %10 : vector<1x128xi32>
    %12 = tpu.iota {dimensions = array<i32: 0>} : vector<16x128xi32>
    %13 = vector.broadcast %11 : vector<1x128xi32> to vector<16x128xi32>
    %14 = arith.cmpi eq, %12, %13 : vector<16x128xi32>
    %15 = arith.extui %14 : vector<16x128xi1> to vector<16x128xi32>
    %16 = arith.sitofp %15 : vector<16x128xi32> to vector<16x128xf32>
    %c0_7 = arith.constant 0 : index
    %c0_8 = arith.constant 0 : index
    %17 = vector.load %arg11[%c0_7, %c0_8] : memref<16x128xf32, #tpu.memory_space<vmem>>, vector<16x128xf32>
    %cst_9 = arith.constant dense<0.000000e+00> : vector<16x128xf32>
    %18 = tpu.matmul %16, %7, %cst_9 {dimension_numbers = #tpu.dot_dimension_numbers<[1], [0], [0], [1], [0, 0, 1, 1], [], []>} : vector<16x128xf32>, vector<128x128xf32>, vector<16x128xf32> -> vector<16x128xf32>
    %19 = arith.addf %17, %18 : vector<16x128xf32>
    %c0_10 = arith.constant 0 : index
    %c0_11 = arith.constant 0 : index
    %20 = vector.load %arg11[%c0_10, %c0_11] : memref<16x128xf32, #tpu.memory_space<vmem>>, vector<16x128xf32>
    tpu.vector_store %arg11[%c0_10, %c0_11], %19 {strides = array<i32>} : memref<16x128xf32, #tpu.memory_space<vmem>>, vector<16x128xf32>,
    %c0_i32_12 = arith.constant 0 : i32
    %21 = arith.cmpi eq, %arg1, %c0_i32_12 : i32
    %22 = arith.extui %21 : i1 to i32
    %c0_i32_13 = arith.constant 0 : i32
    %23 = arith.cmpi ne, %22, %c0_i32_13 : i32
    scf.if %23 {
      %c0_14 = arith.constant 0 : index
      %c0_15 = arith.constant 0 : index
      %24 = vector.load %arg10[%c0_14, %c0_15] : memref<16x128xf32, #tpu.memory_space<vmem>>, vector<16x128xf32>
      %c0_16 = arith.constant 0 : index
      %c0_17 = arith.constant 0 : index
      %25 = vector.load %arg11[%c0_16, %c0_17] : memref<16x128xf32, #tpu.memory_space<vmem>>, vector<16x128xf32>
      %c0_18 = arith.constant 0 : index
      %c0_19 = arith.constant 0 : index
      %26 = vector.load %arg7[%c0_18, %c0_19] : memref<128x128xf32, #tpu.memory_space<vmem>>, vector<128x128xf32>
      %cst_20 = arith.constant dense<0.000000e+00> : vector<16x128xf32>
      %27 = tpu.matmul %25, %26, %cst_20 {dimension_numbers = #tpu.dot_dimension_numbers<[1], [0], [0], [1], [0, 0, 1, 1], [], []>} : vector<16x128xf32>, vector<128x128xf32>, vector<16x128xf32> -> vector<16x128xf32>
      %28 = arith.addf %24, %27 : vector<16x128xf32>
      %c0_21 = arith.constant 0 : index
      %c0_22 = arith.constant 0 : index
      %29 = vector.load %arg8[%c0_21, %c0_22] : memref<1x128xf32, #tpu.memory_space<vmem>>, vector<1x128xf32>
      %30 = vector.broadcast %29 : vector<1x128xf32> to vector<16x128xf32>
      %31 = arith.addf %28, %30 : vector<16x128xf32>
      %cst_23 = arith.constant 0.000000e+00 : f32
      %32 = vector.broadcast %cst_23 : f32 to vector<16x128xf32>
      %33 = arith.maximumf %31, %32 : vector<16x128xf32>
      %c0_24 = arith.constant 0 : index
      %c0_25 = arith.constant 0 : index
      %34 = vector.load %arg9[%c0_24, %c0_25] : memref<16x128xf32, #tpu.memory_space<vmem>>, vector<16x128xf32>
      tpu.vector_store %arg9[%c0_24, %c0_25], %33 {strides = array<i32>} : memref<16x128xf32, #tpu.memory_space<vmem>>, vector<16x128xf32>,
    } else {
    }
    return
  }
  func.func @transform_0(%arg0: i32, %arg1: i32) -> (i32, i32) {
    %c0_i32 = arith.constant 0 : i32
    %c0_i32_0 = arith.constant 0 : i32
    return %arg0, %c0_i32 : i32, i32
  }
  func.func @transform_1(%arg0: i32, %arg1: i32) -> (i32, i32) {
    %c0_i32 = arith.constant 0 : i32
    %c0_i32_0 = arith.constant 0 : i32
    return %arg1, %c0_i32 : i32, i32
  }
  func.func @transform_2(%arg0: i32, %arg1: i32) -> (i32, i32) {
    %c0_i32 = arith.constant 0 : i32
    %c0_i32_0 = arith.constant 0 : i32
    return %c0_i32, %arg1 : i32, i32
  }
  func.func @transform_3(%arg0: i32, %arg1: i32) -> (i32, i32) {
    %c0_i32 = arith.constant 0 : i32
    %c0_i32_0 = arith.constant 0 : i32
    %c0_i32_1 = arith.constant 0 : i32
    return %c0_i32, %c0_i32_0 : i32, i32
  }
  func.func @transform_4(%arg0: i32, %arg1: i32) -> (i32, i32) {
    %c0_i32 = arith.constant 0 : i32
    %c0_i32_0 = arith.constant 0 : i32
    %c0_i32_1 = arith.constant 0 : i32
    return %c0_i32, %c0_i32_0 : i32, i32
  }
  func.func @transform_5(%arg0: i32, %arg1: i32) -> (i32, i32) {
    %c0_i32 = arith.constant 0 : i32
    %c0_i32_0 = arith.constant 0 : i32
    %c0_i32_1 = arith.constant 0 : i32
    return %c0_i32, %c0_i32_0 : i32, i32
  }
  func.func @transform_6(%arg0: i32, %arg1: i32) -> (i32, i32) {
    %c0_i32 = arith.constant 0 : i32
    %c0_i32_0 = arith.constant 0 : i32
    %c0_i32_1 = arith.constant 0 : i32
    return %c0_i32, %c0_i32_0 : i32, i32
  }
  func.func @transform_7(%arg0: i32, %arg1: i32) -> (i32, i32) {
    %c0_i32 = arith.constant 0 : i32
    %c0_i32_0 = arith.constant 0 : i32
    return %arg0, %c0_i32 : i32, i32
  }
}

</mosaic_0001>

<llo_original>
// kernel: tpu_custom_call.1
$region0: #{tpu_custom_call.1}
  #allocation0 [shape = 'u32[]', space=smem, size = 0x4, offset = 0x4, fixed_abs, tag = 'smem constant byte address 0x4 - core index']
  #allocation1 [shape = 'u32[144,128]{1,0:T(1,128)}', space=vmem, size = 0x12000, scoped, tag = 'internal scratch']
  #allocation2 [shape = 'f32[16,128]{1,0:T(8,128)}', space=vmem, size = 0x2000, scoped, tag = 'scratch operand']
  #allocation3 [shape = 'f32[16,128]{1,0:T(8,128)}', space=vmem, size = 0x2000, scoped, tag = 'scratch operand']
  %s0 = inlined_call_operand.vmem [shape: f32[16,8], index: 0, kind: input, shape index: {}]
  %s1 = inlined_call_operand.vmem [shape: f32[128,21], index: 1, kind: input, shape index: {}]
  %s2 = inlined_call_operand.vmem [shape: s32[1,128], index: 2, kind: input, shape index: {}]
  %s3 = inlined_call_operand.vmem [shape: f32[21,128], index: 3, kind: input, shape index: {}]
  %s4 = inlined_call_operand.vmem [shape: f32[8,128], index: 4, kind: input, shape index: {}]
  %s5 = inlined_call_operand.vmem [shape: f32[128,128], index: 5, kind: input, shape index: {}]
  %s6 = inlined_call_operand.vmem [shape: f32[1,128], index: 6, kind: input, shape index: {}]
  %s7 = inlined_call_operand.hbm [shape: f32[16,128], index: 7, kind: output, shape index: {}]
  %s8 = sld [smem:[#allocation0]]
  $region46: #{tpu_custom_call.1} parent=0
    _
  %s10 = ssub.s32 1, %s8
  %s11 = scalar_select 0, %s10, %s8
  $region1: #{tpu_custom_call.1} parent=0
    #allocation4 [shape = 'u8[8192]{0}', space=vmem, size = 0x2000, scoped, tag = 'output window, operand 0, single buffered']
    #allocation5 [shape = 's32[1]{0}', space=sflag, size = 0x4, scoped, tag = 'scoped memory for tpu_custom_call.1']
    %12 = vsyncpa [#allocation5], 0
    // Predicated region
    $region2: #{tpu_custom_call.1} parent=1 // pred_check
      _
    $region3: #{tpu_custom_call.1} parent=1 // pred_check_branch
      %14 = sbr.rel (0) target = $region5
    $region4: #{tpu_custom_call.1} parent=1 // pred_region
      _
    $region5: #{tpu_custom_call.1} parent=1 // pred_fallthru
      _
    // Predicated region
    $region6: #{tpu_custom_call.1} parent=1 // pred_check
      _
    $region7: #{tpu_custom_call.1} parent=1 // pred_check_branch
      %16 = sbr.rel (0) target = $region9
    $region8: #{tpu_custom_call.1} parent=1 // pred_region
      _
    $region9: #{tpu_custom_call.1} parent=1 // pred_fallthru
      _
    // Predicated region
    $region10: #{tpu_custom_call.1} parent=1 // pred_check
      _
    $region11: #{tpu_custom_call.1} parent=1 // pred_check_branch
      %18 = sbr.rel (0) target = $region13
    $region12: #{tpu_custom_call.1} parent=1 // pred_region
      _
    $region13: #{tpu_custom_call.1} parent=1 // pred_fallthru
      _
    // Predicated region
    $region14: #{tpu_custom_call.1} parent=1 // pred_check
      _
    $region15: #{tpu_custom_call.1} parent=1 // pred_check_branch
      %20 = sbr.rel (0) target = $region17
    $region16: #{tpu_custom_call.1} parent=1 // pred_region
      _
    $region17: #{tpu_custom_call.1} parent=1 // pred_fallthru
      _
    // Predicated region
    $region18: #{tpu_custom_call.1} parent=1 // pred_check
      _
    $region19: #{tpu_custom_call.1} parent=1 // pred_check_branch
      %22 = sbr.rel (0) target = $region21
    $region20: #{tpu_custom_call.1} parent=1 // pred_region
      _
    $region21: #{tpu_custom_call.1} parent=1 // pred_fallthru
      _
    // Predicated region
    $region22: #{tpu_custom_call.1} parent=1 // pred_check
      _
    $region23: #{tpu_custom_call.1} parent=1 // pred_check_branch
      %24 = sbr.rel (0) target = $region25
    $region24: #{tpu_custom_call.1} parent=1 // pred_region
      _
    $region25: #{tpu_custom_call.1} parent=1 // pred_fallthru
      _
    // Predicated region
    $region26: #{tpu_custom_call.1} parent=1 // pred_check
      _
    $region27: #{tpu_custom_call.1} parent=1 // pred_check_branch
      %26 = sbr.rel (0) target = $region29
    $region28: #{tpu_custom_call.1} parent=1 // pred_region
      _
    $region29: #{tpu_custom_call.1} parent=1 // pred_fallthru
      _
    %p27 = scmp.eq.s32.totalorder 0, 0
    // Predicated region
    $region30: #{tpu_custom_call.1} parent=1 // pred_check
      %p28 = pneg %p27
    $region31: #{tpu_custom_call.1} parent=1 // pred_check_branch
      %30 = sbr.rel (%p28) target = $region33
    $region32: #{tpu_custom_call.1} parent=1 // pred_region
      %v31 = vld [vmem:[%s0] sm:$0xff]
      %v32 = vld [vmem:[%s0 + $0x8] sm:$0xff]
      %v33 = vld [vmem:[%s4] sm:$0xff]
      %vm34 = vcmask 64512
      %v36 = vsel %vm34, %v31, 0
      %v39 = vsel %vm34, %v32, 0
      %41 = vmatprep.subr.mxu0 0.0
      %42 = vmatpush1.msra.mxu0 %v33
      %43 = vmatprep.subr.mxu0 0.0
      %44 = vmatpush1.msra.mxu0 0.0
      %45 = vmatprep.subr.mxu0 0.0
      %46 = vmatpush1.msra.mxu0 0.0
      %47 = vmatprep.subr.mxu0 0.0
      %48 = vmatpush1.msra.mxu0 0.0
      %49 = vmatprep.subr.mxu0 0.0
      %50 = vmatpush1.msra.mxu0 0.0
      %51 = vmatprep.subr.mxu0 0.0
      %52 = vmatpush1.msra.mxu0 0.0
      %53 = vmatprep.subr.mxu0 0.0
      %54 = vmatpush1.msra.mxu0 0.0
      %55 = vmatprep.subr.mxu0 0.0
      %56 = vmatpush1.msra.mxu0 0.0
      %57 = vmatprep.subr.mxu0 0.0
      %58 = vmatpush1.msra.mxu0 0.0
      %59 = vmatprep.subr.mxu0 0.0
      %60 = vmatpush1.msra.mxu0 0.0
      %61 = vmatprep.subr.mxu0 0.0
      %62 = vmatpush1.msra.mxu0 0.0
      %63 = vmatprep.subr.mxu0 0.0
      %64 = vmatpush1.msra.mxu0 0.0
      %65 = vmatprep.subr.mxu0 0.0
      %66 = vmatpush1.msra.mxu0 0.0
      %67 = vmatprep.subr.mxu0 0.0
      %68 = vmatpush1.msra.mxu0 0.0
      %69 = vmatprep.subr.mxu0 0.0
      %70 = vmatpush1.msra.mxu0 0.0
      %71 = vmatprep.subr.mxu0 0.0
      %72 = vmatpush1.msra.mxu0 0.0
      %73 = vmatprep.subr.mxu0 0.0
      %74 = vmatpush1.msra.mxu0 0.0
      %75 = vmatprep.subr.mxu0 0.0
      %76 = vmatpush1.msra.mxu0 0.0
      %77 = vmatprep.subr.mxu0 0.0
      %78 = vmatpush1.msra.mxu0 0.0
      %79 = vmatprep.subr.mxu0 0.0
      %80 = vmatpush1.msra.mxu0 0.0
      %81 = vmatprep.subr.mxu0 0.0
      %82 = vmatpush1.msra.mxu0 0.0
      %83 = vmatprep.subr.mxu0 0.0
      %84 = vmatpush1.msra.mxu0 0.0
      %85 = vmatprep.subr.mxu0 0.0
      %86 = vmatpush1.msra.mxu0 0.0
      %87 = vmatprep.subr.mxu0 0.0
      %88 = vmatpush1.msra.mxu0 0.0
      %89 = vmatprep.subr.mxu0 0.0
      %90 = vmatpush1.msra.mxu0 0.0
      %91 = vmatprep.subr.mxu0 0.0
      %92 = vmatpush1.msra.mxu0 0.0
      %93 = vmatprep.subr.mxu0 0.0
      %94 = vmatpush1.msra.mxu0 0.0
      %95 = vmatprep.subr.mxu0 0.0
      %96 = vmatpush1.msra.mxu0 0.0
      %97 = vmatprep.subr.mxu0 0.0
      %98 = vmatpush1.msra.mxu0 0.0
      %99 = vmatprep.subr.mxu0 0.0
      %100 = vmatpush1.msra.mxu0 0.0
      %101 = vmatprep.subr.mxu0 0.0
      %102 = vmatpush1.msra.mxu0 0.0
      %103 = vmatprep.subr.mxu0 0.0
      %104 = vmatpush1.msra.mxu0 0.0
      %105 = vmatprep.mubr.f32.mxu0 0.0
      %106 = vmatmul.mubr.f32.gmra.mrb[0].mxu0 %v36
      %v107 = vpop.f32.mrb[0].mxu0
      %v108 = vadd.f32 0.0, %v107
      %v109 = vpop.f32.mrb[0].mxu0
      %110 = vmatprep.mubr.f32.mxu0 0.0
      %111 = vmatmul.mubr.f32.gmra.mrb[0].mxu0 %v39
      %v112 = vpop.f32.mrb[0].mxu0
      %v113 = vadd.f32 0.0, %v112
      %v114 = vpop.f32.mrb[0].mxu0
      %115 = vdwg.mxu0
      %116 = vst [vmem:[#allocation2] sm:$0xff] %v108
      %117 = vst [vmem:[#allocation2 + $0x8] sm:$0xff] %v113
      %118 = vst [vmem:[#allocation3] sm:$0xff] 0.0
      %119 = vst [vmem:[#allocation3 + $0x8] sm:$0xff] 0.0
    $region33: #{tpu_custom_call.1} parent=1 // pred_fallthru
      _
    %v120 = vld [vmem:[%s1] sm:$0xff]
    %v121 = vld [vmem:[%s1 + $0x8] sm:$0xff]
    %v122 = vld [vmem:[%s1 + $0x10] sm:$0xff]
    %v123 = vld [vmem:[%s1 + $0x18] sm:$0xff]
    %v124 = vld [vmem:[%s1 + $0x20] sm:$0xff]
    %v125 = vld [vmem:[%s1 + $0x28] sm:$0xff]
    %v126 = vld [vmem:[%s1 + $0x30] sm:$0xff]
    %v127 = vld [vmem:[%s1 + $0x38] sm:$0xff]
    %v128 = vld [vmem:[%s1 + $0x40] sm:$0xff]
    %v129 = vld [vmem:[%s1 + $0x48] sm:$0xff]
    %v130 = vld [vmem:[%s1 + $0x50] sm:$0xff]
    %v131 = vld [vmem:[%s1 + $0x58] sm:$0xff]
    %v132 = vld [vmem:[%s1 + $0x60] sm:$0xff]
    %v133 = vld [vmem:[%s1 + $0x68] sm:$0xff]
    %v134 = vld [vmem:[%s1 + $0x70] sm:$0xff]
    %v135 = vld [vmem:[%s1 + $0x78] sm:$0xff]
    %v136 = vld [vmem:[%s3] sm:$0xff]
    %v137 = vld [vmem:[%s3 + $0x8] sm:$0xff]
    %v138 = vld [vmem:[%s3 + $0x10] sm:$0x1f]
    %vm139 = vcmask 171008
    %v141 = vsel %vm139, %v120, 0
    %v144 = vsel %vm139, %v121, 0
    %v147 = vsel %vm139, %v122, 0
    %v150 = vsel %vm139, %v123, 0
    %v153 = vsel %vm139, %v124, 0
    %v156 = vsel %vm139, %v125, 0
    %v159 = vsel %vm139, %v126, 0
    %v162 = vsel %vm139, %v127, 0
    %v165 = vsel %vm139, %v128, 0
    %v168 = vsel %vm139, %v129, 0
    %v171 = vsel %vm139, %v130, 0
    %v174 = vsel %vm139, %v131, 0
    %v177 = vsel %vm139, %v132, 0
    %v180 = vsel %vm139, %v133, 0
    %v183 = vsel %vm139, %v134, 0
    %v186 = vsel %vm139, %v135, 0
    %vm188 = vcmask 1044480
    %v190 = vsel %vm188, %v138, 0
    %192 = vmatprep.subr.mxu0 0.0
    %193 = vmatpush1.msra.mxu0 %v136
    %194 = vmatprep.subr.mxu0 0.0
    %195 = vmatpush1.msra.mxu0 %v137
    %196 = vmatprep.subr.mxu0 0.0
    %197 = vmatpush1.msra.mxu0 %v190
    %198 = vmatprep.subr.mxu0 0.0
    %199 = vmatpush1.msra.mxu0 0.0
    %200 = vmatprep.subr.mxu0 0.0
    %201 = vmatpush1.msra.mxu0 0.0
    %202 = vmatprep.subr.mxu0 0.0
    %203 = vmatpush1.msra.mxu0 0.0
    %204 = vmatprep.subr.mxu0 0.0
    %205 = vmatpush1.msra.mxu0 0.0
    %206 = vmatprep.subr.mxu0 0.0
    %207 = vmatpush1.msra.mxu0 0.0
    %208 = vmatprep.subr.mxu0 0.0
    %209 = vmatpush1.msra.mxu0 0.0
    %210 = vmatprep.subr.mxu0 0.0
    %211 = vmatpush1.msra.mxu0 0.0
    %212 = vmatprep.subr.mxu0 0.0
    %213 = vmatpush1.msra.mxu0 0.0
    %214 = vmatprep.subr.mxu0 0.0
    %215 = vmatpush1.msra.mxu0 0.0
    %216 = vmatprep.subr.mxu0 0.0
    %217 = vmatpush1.msra.mxu0 0.0
    %218 = vmatprep.subr.mxu0 0.0
    %219 = vmatpush1.msra.mxu0 0.0
    %220 = vmatprep.subr.mxu0 0.0
    %221 = vmatpush1.msra.mxu0 0.0
    %222 = vmatprep.subr.mxu0 0.0
    %223 = vmatpush1.msra.mxu0 0.0
    %224 = vmatprep.subr.mxu0 0.0
    %225 = vmatpush1.msra.mxu0 0.0
    %226 = vmatprep.subr.mxu0 0.0
    %227 = vmatpush1.msra.mxu0 0.0
    %228 = vmatprep.subr.mxu0 0.0
    %229 = vmatpush1.msra.mxu0 0.0
    %230 = vmatprep.subr.mxu0 0.0
    %231 = vmatpush1.msra.mxu0 0.0
    %232 = vmatprep.subr.mxu0 0.0
    %233 = vmatpush1.msra.mxu0 0.0
    %234 = vmatprep.subr.mxu0 0.0
    %235 = vmatpush1.msra.mxu0 0.0
    %236 = vmatprep.subr.mxu0 0.0
    %237 = vmatpush1.msra.mxu0 0.0
    %238 = vmatprep.subr.mxu0 0.0
    %239 = vmatpush1.msra.mxu0 0.0
    %240 = vmatprep.subr.mxu0 0.0
    %241 = vmatpush1.msra.mxu0 0.0
    %242 = vmatprep.subr.mxu0 0.0
    %243 = vmatpush1.msra.mxu0 0.0
    %244 = vmatprep.subr.mxu0 0.0
    %245 = vmatpush1.msra.mxu0 0.0
    %246 = vmatprep.subr.mxu0 0.0
    %247 = vmatpush1.msra.mxu0 0.0
    %248 = vmatprep.subr.mxu0 0.0
    %249 = vmatpush1.msra.mxu0 0.0
    %250 = vmatprep.subr.mxu0 0.0
    %251 = vmatpush1.msra.mxu0 0.0
    %252 = vmatprep.subr.mxu0 0.0
    %253 = vmatpush1.msra.mxu0 0.0
    %254 = vmatprep.subr.mxu0 0.0
    %255 = vmatpush1.msra.mxu0 0.0
    %256 = vmatprep.mubr.f32.mxu0 0.0
    %257 = vmatmul.mubr.f32.gmra.mrb[0].mxu0 %v141
    %v258 = vpop.f32.mrb[0].mxu0
    %v259 = vadd.f32 0.0, %v258
    %v260 = vpop.f32.mrb[0].mxu0
    %261 = vmatprep.mubr.f32.mxu0 0.0
    %262 = vmatmul.mubr.f32.gmra.mrb[0].mxu0 %v144
    %v263 = vpop.f32.mrb[0].mxu0
    %v264 = vadd.f32 0.0, %v263
    %v265 = vpop.f32.mrb[0].mxu0
    %266 = vmatprep.mubr.f32.mxu0 0.0
    %267 = vmatmul.mubr.f32.gmra.mrb[0].mxu0 %v147
    %v268 = vpop.f32.mrb[0].mxu0
    %v269 = vadd.f32 0.0, %v268
    %v270 = vpop.f32.mrb[0].mxu0
    %271 = vmatprep.mubr.f32.mxu0 0.0
    %272 = vmatmul.mubr.f32.gmra.mrb[0].mxu0 %v150
    %v273 = vpop.f32.mrb[0].mxu0
    %v274 = vadd.f32 0.0, %v273
    %v275 = vpop.f32.mrb[0].mxu0
    %276 = vmatprep.mubr.f32.mxu0 0.0
    %277 = vmatmul.mubr.f32.gmra.mrb[0].mxu0 %v153
    %v278 = vpop.f32.mrb[0].mxu0
    %v279 = vadd.f32 0.0, %v278
    %v280 = vpop.f32.mrb[0].mxu0
    %281 = vmatprep.mubr.f32.mxu0 0.0
    %282 = vmatmul.mubr.f32.gmra.mrb[0].mxu0 %v156
    %v283 = vpop.f32.mrb[0].mxu0
    %v284 = vadd.f32 0.0, %v283
    %v285 = vpop.f32.mrb[0].mxu0
    %286 = vmatprep.mubr.f32.mxu0 0.0
    %287 = vmatmul.mubr.f32.gmra.mrb[0].mxu0 %v159
    %v288 = vpop.f32.mrb[0].mxu0
    %v289 = vadd.f32 0.0, %v288
    %v290 = vpop.f32.mrb[0].mxu0
    %291 = vmatprep.mubr.f32.mxu0 0.0
    %292 = vmatmul.mubr.f32.gmra.mrb[0].mxu0 %v162
    %v293 = vpop.f32.mrb[0].mxu0
    %v294 = vadd.f32 0.0, %v293
    %v295 = vpop.f32.mrb[0].mxu0
    %296 = vmatprep.mubr.f32.mxu0 0.0
    %297 = vmatmul.mubr.f32.gmra.mrb[0].mxu0 %v165
    %v298 = vpop.f32.mrb[0].mxu0
    %v299 = vadd.f32 0.0, %v298
    %v300 = vpop.f32.mrb[0].mxu0
    %301 = vmatprep.mubr.f32.mxu0 0.0
    %302 = vmatmul.mubr.f32.gmra.mrb[0].mxu0 %v168
    %v303 = vpop.f32.mrb[0].mxu0
    %v304 = vadd.f32 0.0, %v303
    %v305 = vpop.f32.mrb[0].mxu0
    %306 = vmatprep.mubr.f32.mxu0 0.0
    %307 = vmatmul.mubr.f32.gmra.mrb[0].mxu0 %v171
    %v308 = vpop.f32.mrb[0].mxu0
    %v309 = vadd.f32 0.0, %v308
    %v310 = vpop.f32.mrb[0].mxu0
    %311 = vmatprep.mubr.f32.mxu0 0.0
    %312 = vmatmul.mubr.f32.gmra.mrb[0].mxu0 %v174
    %v313 = vpop.f32.mrb[0].mxu0
    %v314 = vadd.f32 0.0, %v313
    %v315 = vpop.f32.mrb[0].mxu0
    %316 = vmatprep.mubr.f32.mxu0 0.0
    %317 = vmatmul.mubr.f32.gmra.mrb[0].mxu0 %v177
    %v318 = vpop.f32.mrb[0].mxu0
    %v319 = vadd.f32 0.0, %v318
    %v320 = vpop.f32.mrb[0].mxu0
    %321 = vmatprep.mubr.f32.mxu0 0.0
    %322 = vmatmul.mubr.f32.gmra.mrb[0].mxu0 %v180
    %v323 = vpop.f32.mrb[0].mxu0
    %v324 = vadd.f32 0.0, %v323
    %v325 = vpop.f32.mrb[0].mxu0
    %326 = vmatprep.mubr.f32.mxu0 0.0
    %327 = vmatmul.mubr.f32.gmra.mrb[0].mxu0 %v183
    %v328 = vpop.f32.mrb[0].mxu0
    %v329 = vadd.f32 0.0, %v328
    %v330 = vpop.f32.mrb[0].mxu0
    %331 = vmatprep.mubr.f32.mxu0 0.0
    %332 = vmatmul.mubr.f32.gmra.mrb[0].mxu0 %v186
    %v333 = vpop.f32.mrb[0].mxu0
    %v334 = vadd.f32 0.0, %v333
    %v335 = vpop.f32.mrb[0].mxu0
    %336 = vdwg.mxu0
    %v337 = vmax.f32 %v259, 0.0
    %v338 = vmax.f32 %v264, 0.0
    %v339 = vmax.f32 %v269, 0.0
    %v340 = vmax.f32 %v274, 0.0
    %v341 = vmax.f32 %v279, 0.0
    %v342 = vmax.f32 %v284, 0.0
    %v343 = vmax.f32 %v289, 0.0
    %v344 = vmax.f32 %v294, 0.0
    %v345 = vmax.f32 %v299, 0.0
    %v346 = vmax.f32 %v304, 0.0
    %v347 = vmax.f32 %v309, 0.0
    %v348 = vmax.f32 %v314, 0.0
    %v349 = vmax.f32 %v319, 0.0
    %v350 = vmax.f32 %v324, 0.0
    %v351 = vmax.f32 %v329, 0.0
    %v352 = vmax.f32 %v334, 0.0
    %v353 = vld [vmem:[%s2] sm:$0x1]
    %s354 = smul.u32 0, 16
    %v355 = vstv %s354
    %v356 = vsub.s32 %v353, %v355
    %v357 = vlaneseq
    %v358 = vshrl.u32 %v357, 7
    %v359 = vadd.s32 %v358, 8
    %v360 = vlaneseq
    %v361 = vshrl.u32 %v360, 7
    %v362 = vsub.s32 0, %v361
    %v363 = vrot.slane %v356, %v362
    %vm364 = vcmp.eq.s32.totalorder %v358, %v363
    %vm365 = vcmp.eq.s32.totalorder %v359, %v363
    %v366 = vsel %vm364, 1, 0
    %v367 = vsel %vm365, 1, 0
    %v368 = vcvt.s32.f32 %v366
    %v369 = vcvt.s32.f32 %v367
    %v370 = vld [vmem:[#allocation3] sm:$0xff]
    %v371 = vld [vmem:[#allocation3 + $0x8] sm:$0xff]
    %372 = vmatprep.subr.mxu0 0.0
    %373 = vmatpush1.msra.mxu0 %v337
    %374 = vmatprep.subr.mxu0 0.0
    %375 = vmatpush1.msra.mxu0 %v338
    %376 = vmatprep.subr.mxu0 0.0
    %377 = vmatpush1.msra.mxu0 %v339
    %378 = vmatprep.subr.mxu0 0.0
    %379 = vmatpush1.msra.mxu0 %v340
    %380 = vmatprep.subr.mxu0 0.0
    %381 = vmatpush1.msra.mxu0 %v341
    %382 = vmatprep.subr.mxu0 0.0
    %383 = vmatpush1.msra.mxu0 %v342
    %384 = vmatprep.subr.mxu0 0.0
    %385 = vmatpush1.msra.mxu0 %v343
    %386 = vmatprep.subr.mxu0 0.0
    %387 = vmatpush1.msra.mxu0 %v344
    %388 = vmatprep.subr.mxu0 0.0
    %389 = vmatpush1.msra.mxu0 %v345
    %390 = vmatprep.subr.mxu0 0.0
    %391 = vmatpush1.msra.mxu0 %v346
    %392 = vmatprep.subr.mxu0 0.0
    %393 = vmatpush1.msra.mxu0 %v347
    %394 = vmatprep.subr.mxu0 0.0
    %395 = vmatpush1.msra.mxu0 %v348
    %396 = vmatprep.subr.mxu0 0.0
    %397 = vmatpush1.msra.mxu0 %v349
    %398 = vmatprep.subr.mxu0 0.0
    %399 = vmatpush1.msra.mxu0 %v350
    %400 = vmatprep.subr.mxu0 0.0
    %401 = vmatpush1.msra.mxu0 %v351
    %402 = vmatprep.subr.mxu0 0.0
    %403 = vmatpush1.msra.mxu0 %v352
    %404 = vmatprep.subr.mxu0 0.0
    %405 = vmatpush1.msra.mxu0 0.0
    %406 = vmatprep.subr.mxu0 0.0
    %407 = vmatpush1.msra.mxu0 0.0
    %408 = vmatprep.subr.mxu0 0.0
    %409 = vmatpush1.msra.mxu0 0.0
    %410 = vmatprep.subr.mxu0 0.0
    %411 = vmatpush1.msra.mxu0 0.0
    %412 = vmatprep.subr.mxu0 0.0
    %413 = vmatpush1.msra.mxu0 0.0
    %414 = vmatprep.subr.mxu0 0.0
    %415 = vmatpush1.msra.mxu0 0.0
    %416 = vmatprep.subr.mxu0 0.0
    %417 = vmatpush1.msra.mxu0 0.0
    %418 = vmatprep.subr.mxu0 0.0
    %419 = vmatpush1.msra.mxu0 0.0
    %420 = vmatprep.subr.mxu0 0.0
    %421 = vmatpush1.msra.mxu0 0.0
    %422 = vmatprep.subr.mxu0 0.0
    %423 = vmatpush1.msra.mxu0 0.0
    %424 = vmatprep.subr.mxu0 0.0
    %425 = vmatpush1.msra.mxu0 0.0
    %426 = vmatprep.subr.mxu0 0.0
    %427 = vmatpush1.msra.mxu0 0.0
    %428 = vmatprep.subr.mxu0 0.0
    %429 = vmatpush1.msra.mxu0 0.0
    %430 = vmatprep.subr.mxu0 0.0
    %431 = vmatpush1.msra.mxu0 0.0
    %432 = vmatprep.subr.mxu0 0.0
    %433 = vmatpush1.msra.mxu0 0.0
    %434 = vmatprep.subr.mxu0 0.0
    %435 = vmatpush1.msra.mxu0 0.0
    %436 = vmatprep.mubr.f32.mxu0 0.0
    %437 = vmatmul.mubr.f32.gmra.mrb[0].mxu0 %v368
    %v438 = vpop.f32.mrb[0].mxu0
    %v439 = vadd.f32 0.0, %v438
    %v440 = vpop.f32.mrb[0].mxu0
    %441 = vmatprep.mubr.f32.mxu0 0.0
    %442 = vmatmul.mubr.f32.gmra.mrb[0].mxu0 %v369
    %v443 = vpop.f32.mrb[0].mxu0
    %v444 = vadd.f32 0.0, %v443
    %v445 = vpop.f32.mrb[0].mxu0
    %446 = vdwg.mxu0
    %v447 = vadd.f32 %v370, %v439
    %v448 = vadd.f32 %v371, %v444
    %449 = vst [vmem:[#allocation3] sm:$0xff] %v447
    %450 = vst [vmem:[#allocation3 + $0x8] sm:$0xff] %v448
    // Predicated region
    $region34: #{tpu_custom_call.1} parent=1 // pred_check
      %p451 = pneg %p27
    $region35: #{tpu_custom_call.1} parent=1 // pred_check_branch
      %453 = sbr.rel (%p451) target = $region37
    $region36: #{tpu_custom_call.1} parent=1 // pred_region
      %v454 = vld [vmem:[#allocation2] sm:$0xff]
      %v455 = vld [vmem:[#allocation2 + $0x8] sm:$0xff]
      %v456 = vld [vmem:[#allocation3] sm:$0xff]
      %v457 = vld [vmem:[#allocation3 + $0x8] sm:$0xff]
      %v458 = vld [vmem:[%s5] sm:$0xff]
      %v459 = vld [vmem:[%s5 + $0x8] sm:$0xff]
      %v460 = vld [vmem:[%s5 + $0x10] sm:$0xff]
      %v461 = vld [vmem:[%s5 + $0x18] sm:$0xff]
      %v462 = vld [vmem:[%s5 + $0x20] sm:$0xff]
      %v463 = vld [vmem:[%s5 + $0x28] sm:$0xff]
      %v464 = vld [vmem:[%s5 + $0x30] sm:$0xff]
      %v465 = vld [vmem:[%s5 + $0x38] sm:$0xff]
      %v466 = vld [vmem:[%s5 + $0x40] sm:$0xff]
      %v467 = vld [vmem:[%s5 + $0x48] sm:$0xff]
      %v468 = vld [vmem:[%s5 + $0x50] sm:$0xff]
      %v469 = vld [vmem:[%s5 + $0x58] sm:$0xff]
      %v470 = vld [vmem:[%s5 + $0x60] sm:$0xff]
      %v471 = vld [vmem:[%s5 + $0x68] sm:$0xff]
      %v472 = vld [vmem:[%s5 + $0x70] sm:$0xff]
      %v473 = vld [vmem:[%s5 + $0x78] sm:$0xff]
      %474 = vmatprep.subr.mxu0 0.0
      %475 = vmatpush1.msra.mxu0 %v458
      %476 = vmatprep.subr.mxu0 0.0
      %477 = vmatpush1.msra.mxu0 %v459
      %478 = vmatprep.subr.mxu0 0.0
      %479 = vmatpush1.msra.mxu0 %v460
      %480 = vmatprep.subr.mxu0 0.0
      %481 = vmatpush1.msra.mxu0 %v461
      %482 = vmatprep.subr.mxu0 0.0
      %483 = vmatpush1.msra.mxu0 %v462
      %484 = vmatprep.subr.mxu0 0.0
      %485 = vmatpush1.msra.mxu0 %v463
      %486 = vmatprep.subr.mxu0 0.0
      %487 = vmatpush1.msra.mxu0 %v464
      %488 = vmatprep.subr.mxu0 0.0
      %489 = vmatpush1.msra.mxu0 %v465
      %490 = vmatprep.subr.mxu0 0.0
      %491 = vmatpush1.msra.mxu0 %v466
      %492 = vmatprep.subr.mxu0 0.0
      %493 = vmatpush1.msra.mxu0 %v467
      %494 = vmatprep.subr.mxu0 0.0
      %495 = vmatpush1.msra.mxu0 %v468
      %496 = vmatprep.subr.mxu0 0.0
      %497 = vmatpush1.msra.mxu0 %v469
      %498 = vmatprep.subr.mxu0 0.0
      %499 = vmatpush1.msra.mxu0 %v470
      %500 = vmatprep.subr.mxu0 0.0
      %501 = vmatpush1.msra.mxu0 %v471
      %502 = vmatprep.subr.mxu0 0.0
      %503 = vmatpush1.msra.mxu0 %v472
      %504 = vmatprep.subr.mxu0 0.0
      %505 = vmatpush1.msra.mxu0 %v473
      %506 = vmatprep.subr.mxu0 0.0
      %507 = vmatpush1.msra.mxu0 0.0
      %508 = vmatprep.subr.mxu0 0.0
      %509 = vmatpush1.msra.mxu0 0.0
      %510 = vmatprep.subr.mxu0 0.0
      %511 = vmatpush1.msra.mxu0 0.0
      %512 = vmatprep.subr.mxu0 0.0
      %513 = vmatpush1.msra.mxu0 0.0
      %514 = vmatprep.subr.mxu0 0.0
      %515 = vmatpush1.msra.mxu0 0.0
      %516 = vmatprep.subr.mxu0 0.0
      %517 = vmatpush1.msra.mxu0 0.0
      %518 = vmatprep.subr.mxu0 0.0
      %519 = vmatpush1.msra.mxu0 0.0
      %520 = vmatprep.subr.mxu0 0.0
      %521 = vmatpush1.msra.mxu0 0.0
      %522 = vmatprep.subr.mxu0 0.0
      %523 = vmatpush1.msra.mxu0 0.0
      %524 = vmatprep.subr.mxu0 0.0
      %525 = vmatpush1.msra.mxu0 0.0
      %526 = vmatprep.subr.mxu0 0.0
      %527 = vmatpush1.msra.mxu0 0.0
      %528 = vmatprep.subr.mxu0 0.0
      %529 = vmatpush1.msra.mxu0 0.0
      %530 = vmatprep.subr.mxu0 0.0
      %531 = vmatpush1.msra.mxu0 0.0
      %532 = vmatprep.subr.mxu0 0.0
      %533 = vmatpush1.msra.mxu0 0.0
      %534 = vmatprep.subr.mxu0 0.0
      %535 = vmatpush1.msra.mxu0 0.0
      %536 = vmatprep.subr.mxu0 0.0
      %537 = vmatpush1.msra.mxu0 0.0
      %538 = vmatprep.mubr.f32.mxu0 0.0
      %539 = vmatmul.mubr.f32.gmra.mrb[0].mxu0 %v456
      %v540 = vpop.f32.mrb[0].mxu0
      %v541 = vadd.f32 0.0, %v540
      %v542 = vpop.f32.mrb[0].mxu0
      %543 = vmatprep.mubr.f32.mxu0 0.0
      %544 = vmatmul.mubr.f32.gmra.mrb[0].mxu0 %v457
      %v545 = vpop.f32.mrb[0].mxu0
      %v546 = vadd.f32 0.0, %v545
      %v547 = vpop.f32.mrb[0].mxu0
      %548 = vdwg.mxu0
      %v549 = vadd.f32 %v454, %v541
      %v550 = vadd.f32 %v455, %v546
      %v551 = vld [vmem:[%s6] sm:$0x1]
      %v553 = vlaneseq
      %v554 = vshrl.u32 %v553, 7
      %v555 = vsub.s32 0, %v554
      %v556 = vrot.slane %v551, %v555
      %v558 = vadd.f32 %v549, %v556
      %v559 = vadd.f32 %v550, %v556
      %v560 = vmax.f32 %v558, 0.0
      %v561 = vmax.f32 %v559, 0.0
      %562 = vst [vmem:[#allocation4] sm:$0xff] %v560
      %563 = vst [vmem:[#allocation4 + $0x8] sm:$0xff] %v561
    $region37: #{tpu_custom_call.1} parent=1 // pred_fallthru
      _
    // Predicated region
    $region38: #{tpu_custom_call.1} parent=1 // pred_check
      _
    $region39: #{tpu_custom_call.1} parent=1 // pred_check_branch
      %565 = sbr.rel (0) target = $region41
    $region40: #{tpu_custom_call.1} parent=1 // pred_region
      %s567 = ssub.s32 256, 256
      %568 = vsyncadd [#allocation5], %s567
      %s569 = sshll.u32 [#allocation4], 4
      %s570 = int_to_ptr.vmem [resolvable:$true] %s569
      %575 = dma.vmem_to_hbm [thread:$0]  %s570, 256, %s7, [#allocation5], 128, 128, 8
    $region41: #{tpu_custom_call.1} parent=1 // pred_fallthru
      _
    // Predicated region
    $region42: #{tpu_custom_call.1} parent=1 // pred_check
      _
    $region43: #{tpu_custom_call.1} parent=1 // pred_check_branch
      %577 = sbr.rel (0) target = $region45
    $region44: #{tpu_custom_call.1} parent=1 // pred_region
      %578 = dma.done [#allocation5], 256
    $region45: #{tpu_custom_call.1} parent=1 // pred_fallthru
      _
    %579 = vsyncpa [#allocation5], 1

</llo_original>
